<compile_context>
chip_gen: v6e
topology: v6e:2x2x1
jax: 0.10.0
libtpu: 0.0.40
codegen_flags: <defaults>
</compile_context>

<pallas_src>
import jax
import jax.numpy as jnp
from jax import lax
from jax.experimental import pallas as pl
from jax.experimental.pallas import tpu as pltpu


def skipgram_kernel(idx_ref, emb_hbm, w_ref, b_ref, out_ref, em_scratch, sem):
    """One grid step = one (B_pad, TN) tile of the logits.

    idx_ref   : (B_pad,) int32 in SMEM (scalar-prefetched token ids)
    emb_hbm   : (V, E)   f32 ref left in HBM (memory_space=pl.ANY)
    w_ref     : (TN, E)  f32 tile of the Linear weight (row-major, no transpose)
    b_ref     : (1, TN)  f32 tile of the Linear bias
    out_ref   : (B_pad, TN) f32 output tile
    em_scratch: (B_pad, E) f32 VMEM scratch holding the gathered embeddings
    sem       : (B_pad,) DMA semaphores for the row gathers
    """
    b_pad = em_scratch.shape[0]
    vsize = emb_hbm.shape[0]

    # ---- Gather the B embedding rows exactly once (first V-tile step). ----
    @pl.when(pl.program_id(0) == 0)
    def _gather():
        # Issue all row DMAs first so their latencies overlap, then wait.
        for b in range(b_pad):
            # Clamp untrusted / padded ids so the DMA can never go OOB.
            row = jnp.clip(idx_ref[b], 0, vsize - 1)
            pltpu.make_async_copy(
                emb_hbm.at[pl.ds(row, 1)],       # (1, E) row of the table
                em_scratch.at[pl.ds(b, 1)],      # (1, E) slot in scratch
                sem.at[b],
            ).start()
        for b in range(b_pad):
            pltpu.make_async_copy(
                emb_hbm.at[pl.ds(0, 1)],         # shape-matching wait descriptor
                em_scratch.at[pl.ds(b, 1)],
                sem.at[b],
            ).wait()

    # ---- Logits tile: (B_pad, E) x (TN, E) contracted on E -> (B_pad, TN). ----
    em = em_scratch[...]
    logits = lax.dot_general(
        em, w_ref[...],
        dimension_numbers=(((1,), (1,)), ((), ())),   # contract on E; no W^T copy
        preferred_element_type=jnp.float32,
    )
    out_ref[...] = (logits + b_ref[...]).astype(out_ref.dtype)


def skipgram_forward(in_tensor, emb_table, w, bias, *, tn=512):
    """in_tensor: (B,) ids; emb_table: (V, E); w: (V, E) Linear weight; bias: (V,).

    tn is the vocab tile width (must be a multiple of 128).
    """
    B = in_tensor.shape[0]
    V, E = emb_table.shape
    assert w.shape == (V, E) and bias.shape == (V,)
    assert tn % 128 == 0, "vocab tile must be lane-dense (multiple of 128)"

    b_pad = max(8, pl.cdiv(B, 8) * 8)        # f32 sublane granularity
    v_pad = pl.cdiv(V, tn) * tn              # lane-dense, tile-divisible vocab

    # Wrapper glue (padding only; at production sizes pick tn | V to skip it).
    ids = jnp.zeros((b_pad,), jnp.int32).at[:B].set(in_tensor.astype(jnp.int32))
    w_p = jnp.pad(w, ((0, v_pad - V), (0, 0)))
    b_p = jnp.pad(bias, (0, v_pad - V)).reshape(1, v_pad)

    out = pl.pallas_call(
        skipgram_kernel,
        out_shape=jax.ShapeDtypeStruct((b_pad, v_pad), jnp.float32),
        grid_spec=pltpu.PrefetchScalarGridSpec(
            num_scalar_prefetch=1,                       # ids -> SMEM
            grid=(v_pad // tn,),
            in_specs=[
                pl.BlockSpec(memory_space=pl.ANY),       # emb table stays in HBM
                pl.BlockSpec((tn, E), lambda j, idx: (j, 0)),   # W tile (streamed)
                pl.BlockSpec((1, tn), lambda j, idx: (0, j)),   # bias tile
            ],
            out_specs=pl.BlockSpec((b_pad, tn), lambda j, idx: (0, j)),
            scratch_shapes=[
                pltpu.VMEM((b_pad, E), jnp.float32),     # gathered embeddings
                pltpu.SemaphoreType.DMA((b_pad,)),       # one sem per row DMA
            ],
        ),
        compiler_params=pltpu.CompilerParams(
            # "arbitrary": the step-0 gather must precede every other tile on
            # the same core (megacore-parallel would skip it on core 1).
            dimension_semantics=("arbitrary",),
        ),
    )(ids, emb_table, w_p, b_p)

    return out[:B, :V]


if __name__ == "__main__":
    # Small shapes consistent with the module; chosen to exercise both the
    # batch padding (6 -> 8) and the vocab padding / multi-tile grid
    # (200 -> 256 with tn=128 => 2 grid steps).
    em_size, v_size, batch = 32, 200, 6

    key = jax.random.PRNGKey(0)
    k_emb, k_w, k_bias, k_idx = jax.random.split(key, 4)

    # init_param(): embedding weight ~ N(0, 1) (row 0 also overwritten, so the
    # padding_idx row is not special in the forward pass).
    emb_table = jax.random.normal(k_emb, (v_size, em_size), dtype=jnp.float32)

    # The module's init_param() zeroes the Linear weight; use a random W here
    # so the matmul path is actually validated numerically (forward semantics
    # are identical regardless of init values).
    w = jax.random.normal(k_w, (v_size, em_size), dtype=jnp.float32) * 0.1

    # nn.Linear bias default init: U(-1/sqrt(in_features), 1/sqrt(in_features)).
    bound = 1.0 / jnp.sqrt(jnp.float32(em_size))
    bias = jax.random.uniform(k_bias, (v_size,), dtype=jnp.float32,
                              minval=-bound, maxval=bound)

    # Token ids in [0, v_size).
    in_tensor = jax.random.randint(k_idx, (batch,), 0, v_size, dtype=jnp.int32)

    out = skipgram_forward(in_tensor, emb_table, w, bias, tn=128)
    out = jax.block_until_ready(out)

    # Pure-JAX reference (same semantics as the PyTorch forward).
    ref = emb_table[in_tensor] @ w.T + bias
    assert out.shape == (batch, v_size)
    assert jnp.allclose(out, ref, atol=1e-5, rtol=1e-5)

    print("KERNEL_OK")
</pallas_src>

<mosaic_0001>
module attributes {stable_mosaic.version = 11 : i64} {
  func.func @skipgram_kernel(%arg0: i32, %arg1: memref<8xi32, #tpu.memory_space<smem>>, %arg2: memref<200x32xf32, #tpu.memory_space<any>>, %arg3: memref<128x32xf32, #tpu.memory_space<vmem>>, %arg4: memref<1x128xf32, #tpu.memory_space<vmem>>, %arg5: memref<8x128xf32, #tpu.memory_space<vmem>>, %arg6: memref<8x32xf32, #tpu.memory_space<vmem>>, %arg7: memref<8x!tpu.dma_semaphore, #tpu.memory_space<semaphore_mem>>) attributes {dimension_semantics = [#tpu.dimension_semantics<arbitrary>], iteration_bounds = array<i64: 2>, scalar_prefetch = 1 : i64, scratch_operands = 2 : i64, tpu.core_type = #tpu.core_type<tc>, window_params = [{}, {transform_indices = @transform_1, window_bounds = array<i64: 128, 32>}, {transform_indices = @transform_2, window_bounds = array<i64: 1, 128>}, {transform_indices = @transform_3, window_bounds = array<i64: 8, 128>}]} {
    %c0_i32 = arith.constant 0 : i32
    %0 = arith.cmpi eq, %arg0, %c0_i32 : i32
    %1 = arith.extui %0 : i1 to i32
    %c0_i32_0 = arith.constant 0 : i32
    %2 = arith.cmpi ne, %1, %c0_i32_0 : i32
    scf.if %2 {
      %c0_8 = arith.constant 0 : index
      %10 = memref.load %arg1[%c0_8] : memref<8xi32, #tpu.memory_space<smem>>
      %c0_i32_9 = arith.constant 0 : i32
      %c199_i32 = arith.constant 199 : i32
      %11 = arith.maxsi %c0_i32_9, %10 : i32
      %12 = arith.minsi %c199_i32, %11 : i32
      %c0_i32_10 = arith.constant 0 : i32
      %c0_i32_11 = arith.constant 0 : i32
      %13 = tpu.memref_slice %arg2[%12, %c0_i32_11] : memref<200x32xf32, #tpu.memory_space<any>> -> memref<1x32xf32, #tpu.memory_space<any>>
      %c0_i32_12 = arith.constant 0 : i32
      %c0_i32_13 = arith.constant 0 : i32
      %14 = tpu.memref_slice %arg6[%c0_i32_12, %c0_i32_13] : memref<8x32xf32, #tpu.memory_space<vmem>> -> memref<1x32xf32, #tpu.memory_space<vmem>>
      %15 = tpu.memref_slice %arg7[%c0_i32_10] : memref<8x!tpu.dma_semaphore, #tpu.memory_space<semaphore_mem>> -> memref<1x!tpu.dma_semaphore, #tpu.memory_space<semaphore_mem>>
      %16 = tpu.memref_squeeze %15 : memref<1x!tpu.dma_semaphore, #tpu.memory_space<semaphore_mem>> -> memref<!tpu.dma_semaphore, #tpu.memory_space<semaphore_mem>>
      tpu.enqueue_dma source(%13 : memref<1x32xf32, #tpu.memory_space<any>>) target(%14 : memref<1x32xf32, #tpu.memory_space<vmem>>) target_semaphore(%16 : memref<!tpu.dma_semaphore, #tpu.memory_space<semaphore_mem>>)
      %c1 = arith.constant 1 : index
      %17 = memref.load %arg1[%c1] : memref<8xi32, #tpu.memory_space<smem>>
      %c0_i32_14 = arith.constant 0 : i32
      %c199_i32_15 = arith.constant 199 : i32
      %18 = arith.maxsi %c0_i32_14, %17 : i32
      %19 = arith.minsi %c199_i32_15, %18 : i32
      %c1_i32 = arith.constant 1 : i32
      %c0_i32_16 = arith.constant 0 : i32
      %20 = tpu.memref_slice %arg2[%19, %c0_i32_16] : memref<200x32xf32, #tpu.memory_space<any>> -> memref<1x32xf32, #tpu.memory_space<any>>
      %c1_i32_17 = arith.constant 1 : i32
      %c0_i32_18 = arith.constant 0 : i32
      %21 = tpu.memref_slice %arg6[%c1_i32_17, %c0_i32_18] : memref<8x32xf32, #tpu.memory_space<vmem>> -> memref<1x32xf32, #tpu.memory_space<vmem>>
      %22 = tpu.memref_slice %arg7[%c1_i32] : memref<8x!tpu.dma_semaphore, #tpu.memory_space<semaphore_mem>> -> memref<1x!tpu.dma_semaphore, #tpu.memory_space<semaphore_mem>>
      %23 = tpu.memref_squeeze %22 : memref<1x!tpu.dma_semaphore, #tpu.memory_space<semaphore_mem>> -> memref<!tpu.dma_semaphore, #tpu.memory_space<semaphore_mem>>
      tpu.enqueue_dma source(%20 : memref<1x32xf32, #tpu.memory_space<any>>) target(%21 : memref<1x32xf32, #tpu.memory_space<vmem>>) target_semaphore(%23 : memref<!tpu.dma_semaphore, #tpu.memory_space<semaphore_mem>>)
      %c2 = arith.constant 2 : index
      %24 = memref.load %arg1[%c2] : memref<8xi32, #tpu.memory_space<smem>>
      %c0_i32_19 = arith.constant 0 : i32
      %c199_i32_20 = arith.constant 199 : i32
      %25 = arith.maxsi %c0_i32_19, %24 : i32
      %26 = arith.minsi %c199_i32_20, %25 : i32
      %c2_i32 = arith.constant 2 : i32
      %c0_i32_21 = arith.constant 0 : i32
      %27 = tpu.memref_slice %arg2[%26, %c0_i32_21] : memref<200x32xf32, #tpu.memory_space<any>> -> memref<1x32xf32, #tpu.memory_space<any>>
      %c2_i32_22 = arith.constant 2 : i32
      %c0_i32_23 = arith.constant 0 : i32
      %28 = tpu.memref_slice %arg6[%c2_i32_22, %c0_i32_23] : memref<8x32xf32, #tpu.memory_space<vmem>> -> memref<1x32xf32, #tpu.memory_space<vmem>>
      %29 = tpu.memref_slice %arg7[%c2_i32] : memref<8x!tpu.dma_semaphore, #tpu.memory_space<semaphore_mem>> -> memref<1x!tpu.dma_semaphore, #tpu.memory_space<semaphore_mem>>
      %30 = tpu.memref_squeeze %29 : memref<1x!tpu.dma_semaphore, #tpu.memory_space<semaphore_mem>> -> memref<!tpu.dma_semaphore, #tpu.memory_space<semaphore_mem>>
      tpu.enqueue_dma source(%27 : memref<1x32xf32, #tpu.memory_space<any>>) target(%28 : memref<1x32xf32, #tpu.memory_space<vmem>>) target_semaphore(%30 : memref<!tpu.dma_semaphore, #tpu.memory_space<semaphore_mem>>)
      %c3 = arith.constant 3 : index
      %31 = memref.load %arg1[%c3] : memref<8xi32, #tpu.memory_space<smem>>
      %c0_i32_24 = arith.constant 0 : i32
      %c199_i32_25 = arith.constant 199 : i32
      %32 = arith.maxsi %c0_i32_24, %31 : i32
      %33 = arith.minsi %c199_i32_25, %32 : i32
      %c3_i32 = arith.constant 3 : i32
      %c0_i32_26 = arith.constant 0 : i32
      %34 = tpu.memref_slice %arg2[%33, %c0_i32_26] : memref<200x32xf32, #tpu.memory_space<any>> -> memref<1x32xf32, #tpu.memory_space<any>>
      %c3_i32_27 = arith.constant 3 : i32
      %c0_i32_28 = arith.constant 0 : i32
      %35 = tpu.memref_slice %arg6[%c3_i32_27, %c0_i32_28] : memref<8x32xf32, #tpu.memory_space<vmem>> -> memref<1x32xf32, #tpu.memory_space<vmem>>
      %36 = tpu.memref_slice %arg7[%c3_i32] : memref<8x!tpu.dma_semaphore, #tpu.memory_space<semaphore_mem>> -> memref<1x!tpu.dma_semaphore, #tpu.memory_space<semaphore_mem>>
      %37 = tpu.memref_squeeze %36 : memref<1x!tpu.dma_semaphore, #tpu.memory_space<semaphore_mem>> -> memref<!tpu.dma_semaphore, #tpu.memory_space<semaphore_mem>>
      tpu.enqueue_dma source(%34 : memref<1x32xf32, #tpu.memory_space<any>>) target(%35 : memref<1x32xf32, #tpu.memory_space<vmem>>) target_semaphore(%37 : memref<!tpu.dma_semaphore, #tpu.memory_space<semaphore_mem>>)
      %c4 = arith.constant 4 : index
      %38 = memref.load %arg1[%c4] : memref<8xi32, #tpu.memory_space<smem>>
      %c0_i32_29 = arith.constant 0 : i32
      %c199_i32_30 = arith.constant 199 : i32
      %39 = arith.maxsi %c0_i32_29, %38 : i32
      %40 = arith.minsi %c199_i32_30, %39 : i32
      %c4_i32 = arith.constant 4 : i32
      %c0_i32_31 = arith.constant 0 : i32
      %41 = tpu.memref_slice %arg2[%40, %c0_i32_31] : memref<200x32xf32, #tpu.memory_space<any>> -> memref<1x32xf32, #tpu.memory_space<any>>
      %c4_i32_32 = arith.constant 4 : i32
      %c0_i32_33 = arith.constant 0 : i32
      %42 = tpu.memref_slice %arg6[%c4_i32_32, %c0_i32_33] : memref<8x32xf32, #tpu.memory_space<vmem>> -> memref<1x32xf32, #tpu.memory_space<vmem>>
      %43 = tpu.memref_slice %arg7[%c4_i32] : memref<8x!tpu.dma_semaphore, #tpu.memory_space<semaphore_mem>> -> memref<1x!tpu.dma_semaphore, #tpu.memory_space<semaphore_mem>>
      %44 = tpu.memref_squeeze %43 : memref<1x!tpu.dma_semaphore, #tpu.memory_space<semaphore_mem>> -> memref<!tpu.dma_semaphore, #tpu.memory_space<semaphore_mem>>
      tpu.enqueue_dma source(%41 : memref<1x32xf32, #tpu.memory_space<any>>) target(%42 : memref<1x32xf32, #tpu.memory_space<vmem>>) target_semaphore(%44 : memref<!tpu.dma_semaphore, #tpu.memory_space<semaphore_mem>>)
      %c5 = arith.constant 5 : index
      %45 = memref.load %arg1[%c5] : memref<8xi32, #tpu.memory_space<smem>>
      %c0_i32_34 = arith.constant 0 : i32
      %c199_i32_35 = arith.constant 199 : i32
      %46 = arith.maxsi %c0_i32_34, %45 : i32
      %47 = arith.minsi %c199_i32_35, %46 : i32
      %c5_i32 = arith.constant 5 : i32
      %c0_i32_36 = arith.constant 0 : i32
      %48 = tpu.memref_slice %arg2[%47, %c0_i32_36] : memref<200x32xf32, #tpu.memory_space<any>> -> memref<1x32xf32, #tpu.memory_space<any>>
      %c5_i32_37 = arith.constant 5 : i32
      %c0_i32_38 = arith.constant 0 : i32
      %49 = tpu.memref_slice %arg6[%c5_i32_37, %c0_i32_38] : memref<8x32xf32, #tpu.memory_space<vmem>> -> memref<1x32xf32, #tpu.memory_space<vmem>>
      %50 = tpu.memref_slice %arg7[%c5_i32] : memref<8x!tpu.dma_semaphore, #tpu.memory_space<semaphore_mem>> -> memref<1x!tpu.dma_semaphore, #tpu.memory_space<semaphore_mem>>
      %51 = tpu.memref_squeeze %50 : memref<1x!tpu.dma_semaphore, #tpu.memory_space<semaphore_mem>> -> memref<!tpu.dma_semaphore, #tpu.memory_space<semaphore_mem>>
      tpu.enqueue_dma source(%48 : memref<1x32xf32, #tpu.memory_space<any>>) target(%49 : memref<1x32xf32, #tpu.memory_space<vmem>>) target_semaphore(%51 : memref<!tpu.dma_semaphore, #tpu.memory_space<semaphore_mem>>)
      %c6 = arith.constant 6 : index
      %52 = memref.load %arg1[%c6] : memref<8xi32, #tpu.memory_space<smem>>
      %c0_i32_39 = arith.constant 0 : i32
      %c199_i32_40 = arith.constant 199 : i32
      %53 = arith.maxsi %c0_i32_39, %52 : i32
      %54 = arith.minsi %c199_i32_40, %53 : i32
      %c6_i32 = arith.constant 6 : i32
      %c0_i32_41 = arith.constant 0 : i32
      %55 = tpu.memref_slice %arg2[%54, %c0_i32_41] : memref<200x32xf32, #tpu.memory_space<any>> -> memref<1x32xf32, #tpu.memory_space<any>>
      %c6_i32_42 = arith.constant 6 : i32
      %c0_i32_43 = arith.constant 0 : i32
      %56 = tpu.memref_slice %arg6[%c6_i32_42, %c0_i32_43] : memref<8x32xf32, #tpu.memory_space<vmem>> -> memref<1x32xf32, #tpu.memory_space<vmem>>
      %57 = tpu.memref_slice %arg7[%c6_i32] : memref<8x!tpu.dma_semaphore, #tpu.memory_space<semaphore_mem>> -> memref<1x!tpu.dma_semaphore, #tpu.memory_space<semaphore_mem>>
      %58 = tpu.memref_squeeze %57 : memref<1x!tpu.dma_semaphore, #tpu.memory_space<semaphore_mem>> -> memref<!tpu.dma_semaphore, #tpu.memory_space<semaphore_mem>>
      tpu.enqueue_dma source(%55 : memref<1x32xf32, #tpu.memory_space<any>>) target(%56 : memref<1x32xf32, #tpu.memory_space<vmem>>) target_semaphore(%58 : memref<!tpu.dma_semaphore, #tpu.memory_space<semaphore_mem>>)
      %c7 = arith.constant 7 : index
      %59 = memref.load %arg1[%c7] : memref<8xi32, #tpu.memory_space<smem>>
      %c0_i32_44 = arith.constant 0 : i32
      %c199_i32_45 = arith.constant 199 : i32
      %60 = arith.maxsi %c0_i32_44, %59 : i32
      %61 = arith.minsi %c199_i32_45, %60 : i32
      %c7_i32 = arith.constant 7 : i32
      %c0_i32_46 = arith.constant 0 : i32
      %62 = tpu.memref_slice %arg2[%61, %c0_i32_46] : memref<200x32xf32, #tpu.memory_space<any>> -> memref<1x32xf32, #tpu.memory_space<any>>
      %c7_i32_47 = arith.constant 7 : i32
      %c0_i32_48 = arith.constant 0 : i32
      %63 = tpu.memref_slice %arg6[%c7_i32_47, %c0_i32_48] : memref<8x32xf32, #tpu.memory_space<vmem>> -> memref<1x32xf32, #tpu.memory_space<vmem>>
      %64 = tpu.memref_slice %arg7[%c7_i32] : memref<8x!tpu.dma_semaphore, #tpu.memory_space<semaphore_mem>> -> memref<1x!tpu.dma_semaphore, #tpu.memory_space<semaphore_mem>>
      %65 = tpu.memref_squeeze %64 : memref<1x!tpu.dma_semaphore, #tpu.memory_space<semaphore_mem>> -> memref<!tpu.dma_semaphore, #tpu.memory_space<semaphore_mem>>
      tpu.enqueue_dma source(%62 : memref<1x32xf32, #tpu.memory_space<any>>) target(%63 : memref<1x32xf32, #tpu.memory_space<vmem>>) target_semaphore(%65 : memref<!tpu.dma_semaphore, #tpu.memory_space<semaphore_mem>>)
      %c0_i32_49 = arith.constant 0 : i32
      %c0_i32_50 = arith.constant 0 : i32
      %c0_i32_51 = arith.constant 0 : i32
      %66 = tpu.memref_slice %arg2[%c0_i32_50, %c0_i32_51] : memref<200x32xf32, #tpu.memory_space<any>> -> memref<1x32xf32, #tpu.memory_space<any>>
      %c0_i32_52 = arith.constant 0 : i32
      %c0_i32_53 = arith.constant 0 : i32
      %67 = tpu.memref_slice %arg6[%c0_i32_52, %c0_i32_53] : memref<8x32xf32, #tpu.memory_space<vmem>> -> memref<1x32xf32, #tpu.memory_space<vmem>>
      %68 = tpu.memref_slice %arg7[%c0_i32_49] : memref<8x!tpu.dma_semaphore, #tpu.memory_space<semaphore_mem>> -> memref<1x!tpu.dma_semaphore, #tpu.memory_space<semaphore_mem>>
      %69 = tpu.memref_squeeze %68 : memref<1x!tpu.dma_semaphore, #tpu.memory_space<semaphore_mem>> -> memref<!tpu.dma_semaphore, #tpu.memory_space<semaphore_mem>>
      tpu.wait_dma2 semaphore(%69 : memref<!tpu.dma_semaphore, #tpu.memory_space<semaphore_mem>>) src(%66 : memref<1x32xf32, #tpu.memory_space<any>>) dst(%67 : memref<1x32xf32, #tpu.memory_space<vmem>>)
      %c1_i32_54 = arith.constant 1 : i32
      %c0_i32_55 = arith.constant 0 : i32
      %c0_i32_56 = arith.constant 0 : i32
      %70 = tpu.memref_slice %arg2[%c0_i32_55, %c0_i32_56] : memref<200x32xf32, #tpu.memory_space<any>> -> memref<1x32xf32, #tpu.memory_space<any>>
      %c1_i32_57 = arith.constant 1 : i32
      %c0_i32_58 = arith.constant 0 : i32
      %71 = tpu.memref_slice %arg6[%c1_i32_57, %c0_i32_58] : memref<8x32xf32, #tpu.memory_space<vmem>> -> memref<1x32xf32, #tpu.memory_space<vmem>>
      %72 = tpu.memref_slice %arg7[%c1_i32_54] : memref<8x!tpu.dma_semaphore, #tpu.memory_space<semaphore_mem>> -> memref<1x!tpu.dma_semaphore, #tpu.memory_space<semaphore_mem>>
      %73 = tpu.memref_squeeze %72 : memref<1x!tpu.dma_semaphore, #tpu.memory_space<semaphore_mem>> -> memref<!tpu.dma_semaphore, #tpu.memory_space<semaphore_mem>>
      tpu.wait_dma2 semaphore(%73 : memref<!tpu.dma_semaphore, #tpu.memory_space<semaphore_mem>>) src(%70 : memref<1x32xf32, #tpu.memory_space<any>>) dst(%71 : memref<1x32xf32, #tpu.memory_space<vmem>>)
      %c2_i32_59 = arith.constant 2 : i32
      %c0_i32_60 = arith.constant 0 : i32
      %c0_i32_61 = arith.constant 0 : i32
      %74 = tpu.memref_slice %arg2[%c0_i32_60, %c0_i32_61] : memref<200x32xf32, #tpu.memory_space<any>> -> memref<1x32xf32, #tpu.memory_space<any>>
      %c2_i32_62 = arith.constant 2 : i32
      %c0_i32_63 = arith.constant 0 : i32
      %75 = tpu.memref_slice %arg6[%c2_i32_62, %c0_i32_63] : memref<8x32xf32, #tpu.memory_space<vmem>> -> memref<1x32xf32, #tpu.memory_space<vmem>>
      %76 = tpu.memref_slice %arg7[%c2_i32_59] : memref<8x!tpu.dma_semaphore, #tpu.memory_space<semaphore_mem>> -> memref<1x!tpu.dma_semaphore, #tpu.memory_space<semaphore_mem>>
      %77 = tpu.memref_squeeze %76 : memref<1x!tpu.dma_semaphore, #tpu.memory_space<semaphore_mem>> -> memref<!tpu.dma_semaphore, #tpu.memory_space<semaphore_mem>>
      tpu.wait_dma2 semaphore(%77 : memref<!tpu.dma_semaphore, #tpu.memory_space<semaphore_mem>>) src(%74 : memref<1x32xf32, #tpu.memory_space<any>>) dst(%75 : memref<1x32xf32, #tpu.memory_space<vmem>>)
      %c3_i32_64 = arith.constant 3 : i32
      %c0_i32_65 = arith.constant 0 : i32
      %c0_i32_66 = arith.constant 0 : i32
      %78 = tpu.memref_slice %arg2[%c0_i32_65, %c0_i32_66] : memref<200x32xf32, #tpu.memory_space<any>> -> memref<1x32xf32, #tpu.memory_space<any>>
      %c3_i32_67 = arith.constant 3 : i32
      %c0_i32_68 = arith.constant 0 : i32
      %79 = tpu.memref_slice %arg6[%c3_i32_67, %c0_i32_68] : memref<8x32xf32, #tpu.memory_space<vmem>> -> memref<1x32xf32, #tpu.memory_space<vmem>>
      %80 = tpu.memref_slice %arg7[%c3_i32_64] : memref<8x!tpu.dma_semaphore, #tpu.memory_space<semaphore_mem>> -> memref<1x!tpu.dma_semaphore, #tpu.memory_space<semaphore_mem>>
      %81 = tpu.memref_squeeze %80 : memref<1x!tpu.dma_semaphore, #tpu.memory_space<semaphore_mem>> -> memref<!tpu.dma_semaphore, #tpu.memory_space<semaphore_mem>>
      tpu.wait_dma2 semaphore(%81 : memref<!tpu.dma_semaphore, #tpu.memory_space<semaphore_mem>>) src(%78 : memref<1x32xf32, #tpu.memory_space<any>>) dst(%79 : memref<1x32xf32, #tpu.memory_space<vmem>>)
      %c4_i32_69 = arith.constant 4 : i32
      %c0_i32_70 = arith.constant 0 : i32
      %c0_i32_71 = arith.constant 0 : i32
      %82 = tpu.memref_slice %arg2[%c0_i32_70, %c0_i32_71] : memref<200x32xf32, #tpu.memory_space<any>> -> memref<1x32xf32, #tpu.memory_space<any>>
      %c4_i32_72 = arith.constant 4 : i32
      %c0_i32_73 = arith.constant 0 : i32
      %83 = tpu.memref_slice %arg6[%c4_i32_72, %c0_i32_73] : memref<8x32xf32, #tpu.memory_space<vmem>> -> memref<1x32xf32, #tpu.memory_space<vmem>>
      %84 = tpu.memref_slice %arg7[%c4_i32_69] : memref<8x!tpu.dma_semaphore, #tpu.memory_space<semaphore_mem>> -> memref<1x!tpu.dma_semaphore, #tpu.memory_space<semaphore_mem>>
      %85 = tpu.memref_squeeze %84 : memref<1x!tpu.dma_semaphore, #tpu.memory_space<semaphore_mem>> -> memref<!tpu.dma_semaphore, #tpu.memory_space<semaphore_mem>>
      tpu.wait_dma2 semaphore(%85 : memref<!tpu.dma_semaphore, #tpu.memory_space<semaphore_mem>>) src(%82 : memref<1x32xf32, #tpu.memory_space<any>>) dst(%83 : memref<1x32xf32, #tpu.memory_space<vmem>>)
      %c5_i32_74 = arith.constant 5 : i32
      %c0_i32_75 = arith.constant 0 : i32
      %c0_i32_76 = arith.constant 0 : i32
      %86 = tpu.memref_slice %arg2[%c0_i32_75, %c0_i32_76] : memref<200x32xf32, #tpu.memory_space<any>> -> memref<1x32xf32, #tpu.memory_space<any>>
      %c5_i32_77 = arith.constant 5 : i32
      %c0_i32_78 = arith.constant 0 : i32
      %87 = tpu.memref_slice %arg6[%c5_i32_77, %c0_i32_78] : memref<8x32xf32, #tpu.memory_space<vmem>> -> memref<1x32xf32, #tpu.memory_space<vmem>>
      %88 = tpu.memref_slice %arg7[%c5_i32_74] : memref<8x!tpu.dma_semaphore, #tpu.memory_space<semaphore_mem>> -> memref<1x!tpu.dma_semaphore, #tpu.memory_space<semaphore_mem>>
      %89 = tpu.memref_squeeze %88 : memref<1x!tpu.dma_semaphore, #tpu.memory_space<semaphore_mem>> -> memref<!tpu.dma_semaphore, #tpu.memory_space<semaphore_mem>>
      tpu.wait_dma2 semaphore(%89 : memref<!tpu.dma_semaphore, #tpu.memory_space<semaphore_mem>>) src(%86 : memref<1x32xf32, #tpu.memory_space<any>>) dst(%87 : memref<1x32xf32, #tpu.memory_space<vmem>>)
      %c6_i32_79 = arith.constant 6 : i32
      %c0_i32_80 = arith.constant 0 : i32
      %c0_i32_81 = arith.constant 0 : i32
      %90 = tpu.memref_slice %arg2[%c0_i32_80, %c0_i32_81] : memref<200x32xf32, #tpu.memory_space<any>> -> memref<1x32xf32, #tpu.memory_space<any>>
      %c6_i32_82 = arith.constant 6 : i32
      %c0_i32_83 = arith.constant 0 : i32
      %91 = tpu.memref_slice %arg6[%c6_i32_82, %c0_i32_83] : memref<8x32xf32, #tpu.memory_space<vmem>> -> memref<1x32xf32, #tpu.memory_space<vmem>>
      %92 = tpu.memref_slice %arg7[%c6_i32_79] : memref<8x!tpu.dma_semaphore, #tpu.memory_space<semaphore_mem>> -> memref<1x!tpu.dma_semaphore, #tpu.memory_space<semaphore_mem>>
      %93 = tpu.memref_squeeze %92 : memref<1x!tpu.dma_semaphore, #tpu.memory_space<semaphore_mem>> -> memref<!tpu.dma_semaphore, #tpu.memory_space<semaphore_mem>>
      tpu.wait_dma2 semaphore(%93 : memref<!tpu.dma_semaphore, #tpu.memory_space<semaphore_mem>>) src(%90 : memref<1x32xf32, #tpu.memory_space<any>>) dst(%91 : memref<1x32xf32, #tpu.memory_space<vmem>>)
      %c7_i32_84 = arith.constant 7 : i32
      %c0_i32_85 = arith.constant 0 : i32
      %c0_i32_86 = arith.constant 0 : i32
      %94 = tpu.memref_slice %arg2[%c0_i32_85, %c0_i32_86] : memref<200x32xf32, #tpu.memory_space<any>> -> memref<1x32xf32, #tpu.memory_space<any>>
      %c7_i32_87 = arith.constant 7 : i32
      %c0_i32_88 = arith.constant 0 : i32
      %95 = tpu.memref_slice %arg6[%c7_i32_87, %c0_i32_88] : memref<8x32xf32, #tpu.memory_space<vmem>> -> memref<1x32xf32, #tpu.memory_space<vmem>>
      %96 = tpu.memref_slice %arg7[%c7_i32_84] : memref<8x!tpu.dma_semaphore, #tpu.memory_space<semaphore_mem>> -> memref<1x!tpu.dma_semaphore, #tpu.memory_space<semaphore_mem>>
      %97 = tpu.memref_squeeze %96 : memref<1x!tpu.dma_semaphore, #tpu.memory_space<semaphore_mem>> -> memref<!tpu.dma_semaphore, #tpu.memory_space<semaphore_mem>>
      tpu.wait_dma2 semaphore(%97 : memref<!tpu.dma_semaphore, #tpu.memory_space<semaphore_mem>>) src(%94 : memref<1x32xf32, #tpu.memory_space<any>>) dst(%95 : memref<1x32xf32, #tpu.memory_space<vmem>>)
    } else {
    }
    %c0 = arith.constant 0 : index
    %c0_1 = arith.constant 0 : index
    %3 = vector.load %arg6[%c0, %c0_1] : memref<8x32xf32, #tpu.memory_space<vmem>>, vector<8x32xf32>
    %c0_2 = arith.constant 0 : index
    %c0_3 = arith.constant 0 : index
    %4 = vector.load %arg3[%c0_2, %c0_3] : memref<128x32xf32, #tpu.memory_space<vmem>>, vector<128x32xf32>
    %cst = arith.constant dense<0.000000e+00> : vector<8x128xf32>
    %5 = tpu.matmul %3, %4, %cst {dimension_numbers = #tpu.dot_dimension_numbers<[1], [1], [0], [0], [0, 0, 1, 0], [], []>} : vector<8x32xf32>, vector<128x32xf32>, vector<8x128xf32> -> vector<8x128xf32>
    %c0_4 = arith.constant 0 : index
    %c0_5 = arith.constant 0 : index
    %6 = vector.load %arg4[%c0_4, %c0_5] : memref<1x128xf32, #tpu.memory_space<vmem>>, vector<1x128xf32>
    %7 = vector.broadcast %6 : vector<1x128xf32> to vector<8x128xf32>
    %8 = arith.addf %5, %7 : vector<8x128xf32>
    %c0_6 = arith.constant 0 : index
    %c0_7 = arith.constant 0 : index
    %9 = vector.load %arg5[%c0_6, %c0_7] : memref<8x128xf32, #tpu.memory_space<vmem>>, vector<8x128xf32>
    tpu.vector_store %arg5[%c0_6, %c0_7], %8 {strides = array<i32>} : memref<8x128xf32, #tpu.memory_space<vmem>>, vector<8x128xf32>,
    return
  }
  func.func @transform_1(%arg0: i32, %arg1: memref<8xi32, #tpu.memory_space<smem>>) -> (i32, i32) {
    %c0_i32 = arith.constant 0 : i32
    %c0_i32_0 = arith.constant 0 : i32
    return %arg0, %c0_i32 : i32, i32
  }
  func.func @transform_2(%arg0: i32, %arg1: memref<8xi32, #tpu.memory_space<smem>>) -> (i32, i32) {
    %c0_i32 = arith.constant 0 : i32
    %c0_i32_0 = arith.constant 0 : i32
    return %c0_i32, %arg0 : i32, i32
  }
  func.func @transform_3(%arg0: i32, %arg1: memref<8xi32, #tpu.memory_space<smem>>) -> (i32, i32) {
    %c0_i32 = arith.constant 0 : i32
    %c0_i32_0 = arith.constant 0 : i32
    return %c0_i32, %arg0 : i32, i32
  }
}

</mosaic_0001>

<llo_original>
// kernel: tpu_custom_call.1
$region0: #{tpu_custom_call.1}
  #allocation0 [shape = 'u32[]', space=smem, size = 0x4, offset = 0x4, fixed_abs, tag = 'smem constant byte address 0x4 - core index']
  #allocation1 [shape = 'u32[144,128]{1,0:T(1,128)}', space=vmem, size = 0x12000, scoped, tag = 'internal scratch']
  #allocation2 [shape = 'f32[8,32]{1,0:T(8,128)}', space=vmem, size = 0x1000, scoped, tag = 'scratch operand']
  #allocation3 [shape = 's32[8]{0}', space=sflag, size = 0x20, scoped, tag = 'scratch operand']
  #allocation4 [shape = 's32[1]{0}', space=sflag, size = 0x4, scoped, tag = 'scoped memory for tpu_custom_call.1']
  #allocation5 [shape = 'u8[512]{0}', space=smem, size = 0x200, scoped, tag = 'prefetched SMEM operand 0']
  #allocation8 [shape = 's32[]', space=sflag, size = 0x4, offset = 0, fixed_abs, tag = 'sflag constant byte address 0x0 - dummy sync flag']
  #allocation9 [shape = 's32[]', space=sflag, size = 0x4, offset = 0, fixed_abs, tag = 'sflag constant byte address 0x0 - dummy sync flag']
  #allocation10 [shape = 's32[]', space=sflag, size = 0x4, offset = 0, fixed_abs, tag = 'sflag constant byte address 0x0 - dummy sync flag']
  #allocation11 [shape = 's32[]', space=sflag, size = 0x4, offset = 0, fixed_abs, tag = 'sflag constant byte address 0x0 - dummy sync flag']
  #allocation12 [shape = 's32[]', space=sflag, size = 0x4, offset = 0, fixed_abs, tag = 'sflag constant byte address 0x0 - dummy sync flag']
  #allocation13 [shape = 's32[]', space=sflag, size = 0x4, offset = 0, fixed_abs, tag = 'sflag constant byte address 0x0 - dummy sync flag']
  #allocation14 [shape = 's32[]', space=sflag, size = 0x4, offset = 0, fixed_abs, tag = 'sflag constant byte address 0x0 - dummy sync flag']
  #allocation15 [shape = 's32[]', space=sflag, size = 0x4, offset = 0, fixed_abs, tag = 'sflag constant byte address 0x0 - dummy sync flag']
  %s0 = inlined_call_operand.vmem [shape: s32[8], index: 0, kind: input, shape index: {}]
  %s1 = inlined_call_operand.vmem [shape: f32[200,32], index: 1, kind: input, shape index: {}]
  %s2 = inlined_call_operand.vmem [shape: f32[256,32], index: 2, kind: input, shape index: {}]
  %s3 = inlined_call_operand.vmem [shape: f32[1,256], index: 3, kind: input, shape index: {}]
  %s4 = inlined_call_operand.hbm [shape: f32[8,256], index: 4, kind: output, shape index: {}]
  %s5 = sld [smem:[#allocation0]]
  $region285: #{tpu_custom_call.1} parent=0
    _
  %s7 = ssub.s32 1, %s5
  %s8 = scalar_select 0, %s7, %s5
  %s9 = sshll.u32 %s0, 4
  %s10 = int_to_ptr.vmem [resolvable:$true] %s9
  %12 = dma.vmem_to_smem %s10, 16, [#allocation5], [#allocation4]
  %13 = dma.done [#allocation4], 16
  %14 = sfence
  $region1: #{tpu_custom_call.1} parent=0
    #allocation6 [shape = 'u8[8192]{0}', space=vmem, size = 0x2000, scoped, tag = 'output window, operand 0']
    #allocation7 [shape = 's32[2]{0}', space=sflag, size = 0x8, scoped, tag = 'scoped memory for tpu_custom_call.1']
    %15 = vsyncpa [#allocation7], 0
    %s16 = scalar_lea.sflag [#allocation7], 1
    %17 = vsyncpa %s16, 0
    loop: start=0, step=1, limit=4
    $region2: #{tpu_custom_call.1} parent=1 // loop_pre_header
      _
    $region3: #{tpu_custom_call.1} parent=1 // loop_header
      %s19 = sphi 0, %s23
      %p20 = scmp.ge.s32.totalorder %s19, 4
      %s29 = sphi 0, %s31
      %s32 = sphi 0, %s29
      %s33 = sphi 0, %s32
      %s49 = sphi 0, %s33
      %s55 = sphi 0, %s57
      %s58 = sphi 0, %s55
      %s59 = sphi 0, %s58
      %s75 = sphi 0, %s59
      %s81 = sphi 0, %s83
      %s84 = sphi 0, %s81
      %s85 = sphi 0, %s84
      %s101 = sphi 0, %s85
    $region4: #{tpu_custom_call.1} parent=1 // loop_header_branch
      %22 = sbr.rel (%p20) target = $region8
    $region5: #{tpu_custom_call.1} parent=1 // loop_body
      %s24 = ssub.s32 %s19, 1
      %s25 = ssub.s32 %s19, 2
      %s26 = sadd.s32 %s19, 1
      %s27 = ssub.s32 %s19, %s26
      %p28 = scmp.eq.s32.totalorder %s27, 0
      %s30 = sadd.s32 %s29, 1
      %s31 = scalar_select %p28, %s29, %s30
      %p34 = pneg %p28
      %p35 = scmp.eq.s32.totalorder %s19, 1
      %p36 = por %p34, %p35
      %p37 = scmp.ne.s32.totalorder %s29, %s32
      %p38 = scmp.eq.s32.totalorder %s19, 0
      %p39 = por %p37, %p38
      %p40 = scmp.ne.s32.totalorder %s29, %s32
      %p41 = scmp.eq.s32.totalorder %s24, 1
      %p42 = por %p40, %p41
      %p43 = scmp.ne.s32.totalorder %s32, %s33
      %p44 = scmp.eq.s32.totalorder %s24, 0
      %p45 = por %p43, %p44
      %p46 = scmp.ne.s32.totalorder %s32, %s33
      %p47 = scmp.eq.s32.totalorder %s25, 1
      %p48 = por %p46, %p47
      %p50 = scmp.ne.s32.totalorder %s33, %s49
      %p51 = scmp.eq.s32.totalorder %s25, 0
      %p52 = por %p50, %p51
      %s53 = ssub.s32 %s19, %s26
      %p54 = scmp.eq.s32.totalorder %s53, 0
      %s56 = sadd.s32 %s55, 1
      %s57 = scalar_select %p54, %s55, %s56
      %p60 = pneg %p54
      %p61 = scmp.eq.s32.totalorder %s19, 1
      %p62 = por %p60, %p61
      %p63 = scmp.ne.s32.totalorder %s55, %s58
      %p64 = scmp.eq.s32.totalorder %s19, 0
      %p65 = por %p63, %p64
      %p66 = scmp.ne.s32.totalorder %s55, %s58
      %p67 = scmp.eq.s32.totalorder %s24, 1
      %p68 = por %p66, %p67
      %p69 = scmp.ne.s32.totalorder %s58, %s59
      %p70 = scmp.eq.s32.totalorder %s24, 0
      %p71 = por %p69, %p70
      %p72 = scmp.ne.s32.totalorder %s58, %s59
      %p73 = scmp.eq.s32.totalorder %s25, 1
      %p74 = por %p72, %p73
      %p76 = scmp.ne.s32.totalorder %s59, %s75
      %p77 = scmp.eq.s32.totalorder %s25, 0
      %p78 = por %p76, %p77
      %s79 = ssub.s32 %s19, %s26
      %p80 = scmp.eq.s32.totalorder %s79, 0
      %s82 = sadd.s32 %s81, 1
      %s83 = scalar_select %p80, %s81, %s82
      %p86 = pneg %p80
      %p87 = scmp.eq.s32.totalorder %s19, 1
      %p88 = por %p86, %p87
      %p89 = scmp.ne.s32.totalorder %s81, %s84
      %p90 = scmp.eq.s32.totalorder %s19, 0
      %p91 = por %p89, %p90
      %p92 = scmp.ne.s32.totalorder %s81, %s84
      %p93 = scmp.eq.s32.totalorder %s24, 1
      %p94 = por %p92, %p93
      %p95 = scmp.ne.s32.totalorder %s84, %s85
      %p96 = scmp.eq.s32.totalorder %s24, 0
      %p97 = por %p95, %p96
      %p98 = scmp.ne.s32.totalorder %s84, %s85
      %p99 = scmp.eq.s32.totalorder %s25, 1
      %p100 = por %p98, %p99
      %p102 = scmp.ne.s32.totalorder %s85, %s101
      %p103 = scmp.eq.s32.totalorder %s25, 0
      %p104 = por %p102, %p103
      %p105 = scmp.le.s32.totalorder 1, %s19
      %p106 = scmp.lt.s32.totalorder %s19, 3
      %p107 = pnand %p105, %p106
      %p108 = pneg %p107
      // Predicated region
      $region9: #{tpu_custom_call.1} parent=5 // pred_check
        _
      $region10: #{tpu_custom_call.1} parent=5 // pred_check_branch
        %110 = sbr.rel (%p107) target = $region12
      $region11: #{tpu_custom_call.1} parent=5 // pred_region
        %s111 = ssub.s32 %s19, 1
      $region12: #{tpu_custom_call.1} parent=5 // pred_fallthru
        _
      %p112 = scmp.lt.s32.totalorder %s19, 2
      // Predicated region
      $region13: #{tpu_custom_call.1} parent=5 // pred_check
        %p113 = pneg %p112
      $region14: #{tpu_custom_call.1} parent=5 // pred_check_branch
        %115 = sbr.rel (%p113) target = $region16
      $region15: #{tpu_custom_call.1} parent=5 // pred_region
        // Predicated region
        $region17: #{tpu_custom_call.1} parent=15 // pred_check
          %p116 = pneg %p39
        $region18: #{tpu_custom_call.1} parent=15 // pred_check_branch
          %118 = sbr.rel (%p116) target = $region20
        $region19: #{tpu_custom_call.1} parent=15 // pred_region
          %s119 = smul.u32 16, %s19
          %p120 = scmp.lt.s32.totalorder %s119, 31
          %s121 = scalar_select %p120, %s119, 31
          %s122 = smul.addr %s121, 8
          %s123 = scalar_lea.vmem %s2, %s122
          %s124 = smul.u32 16, %s19
        $region20: #{tpu_custom_call.1} parent=15 // pred_fallthru
          _
        // Predicated region
        $region21: #{tpu_custom_call.1} parent=15 // pred_check
          %p125 = pneg %p65
        $region22: #{tpu_custom_call.1} parent=15 // pred_check_branch
          %127 = sbr.rel (%p125) target = $region24
        $region23: #{tpu_custom_call.1} parent=15 // pred_region
          %p128 = scmp.lt.s32.totalorder %s19, 1
          %s129 = scalar_select %p128, %s19, 1
          %s130 = scalar_lea.vmem %s3, %s129
        $region24: #{tpu_custom_call.1} parent=15 // pred_fallthru
          _
      $region16: #{tpu_custom_call.1} parent=5 // pred_fallthru
        _
      %p131 = scmp.le.s32.totalorder 1, %s19
      %p132 = scmp.lt.s32.totalorder %s19, 3
      %p133 = pnand %p131, %p132
      %p134 = pneg %p133
      // Predicated region
      $region25: #{tpu_custom_call.1} parent=5 // pred_check
        _
      $region26: #{tpu_custom_call.1} parent=5 // pred_check_branch
        %136 = sbr.rel (%p133) target = $region28
      $region27: #{tpu_custom_call.1} parent=5 // pred_region
        %s137 = ssub.s32 %s19, 1
        %s138 = smul.u32 16, %s24
        %p139 = scmp.lt.s32.totalorder %s138, 31
        %s140 = scalar_select %p139, %s138, 31
        %s141 = smul.addr %s140, 8
        %s142 = scalar_lea.vmem %s2, %s141
        %p143 = pneg %p45
        %p144 = pneg %p42
        %p145 = scmp.lt.s32.totalorder %s24, 1
        %s146 = scalar_select %p145, %s24, 1
        %s147 = scalar_lea.vmem %s3, %s146
        %p148 = pneg %p71
        %p149 = pneg %p68
        %p150 = pneg %p97
        %p151 = pneg %p94
        %s152 = sand.u32 %s84, 1
        %s153 = scalar_lea.sflag [#allocation7], %s152
        %s154 = sand.u32 %s84, 1
        %s155 = smul.addr %s154, 8
        %s156 = scalar_lea.vmem [#allocation6], %s155
        %s157 = smul.u32 16, %s24
        %p158 = scmp.lt.s32.totalorder %s157, 31
        %s159 = scalar_select %p158, %s157, 31
        %s160 = smul.addr %s159, 8
        %s161 = scalar_lea.vmem %s2, %s160
        %s162 = smul.u32 16, %s24
        %p163 = scmp.lt.s32.totalorder %s24, 1
        %s164 = scalar_select %p163, %s24, 1
        %s165 = scalar_lea.vmem %s3, %s164
        %p166 = scmp.eq.s32.totalorder %s24, 0
        // Predicated region
        $region29: #{tpu_custom_call.1} parent=27 // pred_check
          %p167 = pneg %p166
        $region30: #{tpu_custom_call.1} parent=27 // pred_check_branch
          %169 = sbr.rel (%p167) target = $region32
        $region31: #{tpu_custom_call.1} parent=27 // pred_region
          %s170 = sld [smem:[#allocation5]]
          %p171 = scmp.gt.s32.totalorder %s170, 0
          %s172 = scalar_select %p171, %s170, 0
          %p173 = scmp.lt.s32.totalorder %s172, 199
          %s174 = scalar_select %p173, %s172, 199
          %s175 = scalar_lea.vmem %s1, %s174
          %p177 = scmp.lt.u32.totalorder 1, 8
          %p178 = pneg %p177
          // Predicated region
          $region33: #{tpu_custom_call.1} parent=31 // pred_check
            _
          $region34: #{tpu_custom_call.1} parent=31 // pred_check_branch
            %180 = sbr.rel (%p177) target = $region36
          $region35: #{tpu_custom_call.1} parent=31 // pred_region
            %s196 = sand.u32 1, 7
            %p197 = scmp.eq.s32.totalorder %s196, 0
            %p198 = pneg %p197
            // Predicated region
            $region48: #{tpu_custom_call.1} parent=35 // pred_check
              _
            $region49: #{tpu_custom_call.1} parent=35 // pred_check_branch
              %200 = sbr.rel (%p197) target = $region51
            $region50: #{tpu_custom_call.1} parent=35 // pred_region
              %s201 = sand.u32 1, 7
              %s202 = ssub.s32 1, %s201
              %s203 = scalar_lea.vmem %s175, %s202
              %s204 = ssub.s32 1, %s201
              %s205 = scalar_lea.vmem [#allocation2], %s204
              %s206 = sshll.u32 1, %s201
              %s207 = ssub.s32 %s206, 1
              loop: start=0, step=1, limit=1
              $region52: #{tpu_custom_call.1} parent=50 // loop_pre_header
                _
              $region53: #{tpu_custom_call.1} parent=50 // loop_header
                %s209 = sphi 0, %s213
                %p210 = scmp.ge.s32.totalorder %s209, 1
                %s214 = sphi %s203, %s203
                %s215 = sphi %s205, %s205
              $region54: #{tpu_custom_call.1} parent=50 // loop_header_branch
                %212 = sbr.rel (%p210) target = $region58
              $region55: #{tpu_custom_call.1} parent=50 // loop_body
                %v216 = vld [vmem:[%s214] sm:%s207]
                %217 = vst [vmem:[%s215] sm:%s207] %v216
              $region56: #{tpu_custom_call.1} parent=50 // loop_footer
                %s213 = sadd.s32 1, %s209
              $region57: #{tpu_custom_call.1} parent=50 // loop_footer_branch
                %208 = sbr.rel target = $region53
              $region58: #{tpu_custom_call.1} parent=50 // loop_exit
                _
            $region51: #{tpu_custom_call.1} parent=35 // pred_fallthru
              _
          $region36: #{tpu_custom_call.1} parent=31 // pred_fallthru
            _
          // Predicated region
          $region37: #{tpu_custom_call.1} parent=31 // pred_check
            %p181 = pneg %p177
          $region38: #{tpu_custom_call.1} parent=31 // pred_check_branch
            %183 = sbr.rel (%p181) target = $region40
          $region39: #{tpu_custom_call.1} parent=31 // pred_region
            %s184 = sshll.u32 1, 1
            %s185 = ssub.s32 %s184, 1
            loop: start=0, step=1, limit=1
            $region41: #{tpu_custom_call.1} parent=39 // loop_pre_header
              _
            $region42: #{tpu_custom_call.1} parent=39 // loop_header
              %s187 = sphi 0, %s191
              %p188 = scmp.ge.s32.totalorder %s187, 1
              %s192 = sphi %s175, %s175
              %s193 = sphi [#allocation2], [#allocation2]
            $region43: #{tpu_custom_call.1} parent=39 // loop_header_branch
              %190 = sbr.rel (%p188) target = $region47
            $region44: #{tpu_custom_call.1} parent=39 // loop_body
              %v194 = vld [vmem:[%s192] sm:%s185]
              %195 = vst [vmem:[%s193] sm:%s185] %v194
            $region45: #{tpu_custom_call.1} parent=39 // loop_footer
              %s191 = sadd.s32 1, %s187
            $region46: #{tpu_custom_call.1} parent=39 // loop_footer_branch
              %186 = sbr.rel target = $region42
            $region47: #{tpu_custom_call.1} parent=39 // loop_exit
              _
          $region40: #{tpu_custom_call.1} parent=31 // pred_fallthru
            _
          // Predicated region
          $region59: #{tpu_custom_call.1} parent=31 // pred_check
            _
          $region60: #{tpu_custom_call.1} parent=31 // pred_check_branch
            %220 = sbr.rel (0) target = $region62
          $region61: #{tpu_custom_call.1} parent=31 // pred_region
            %221 = vsyncadd [#allocation3], 16
          $region62: #{tpu_custom_call.1} parent=31 // pred_fallthru
            _
          %s222 = sld [smem:[#allocation5 + $0x1]]
          %p223 = scmp.gt.s32.totalorder %s222, 0
          %s224 = scalar_select %p223, %s222, 0
          %p225 = scmp.lt.s32.totalorder %s224, 199
          %s226 = scalar_select %p225, %s224, 199
          %s227 = scalar_lea.vmem %s1, %s226
          %s228 = scalar_lea.vmem [#allocation2], 1
          %s229 = scalar_lea.sflag [#allocation3], 1
          %p231 = scmp.lt.u32.totalorder 1, 8
          %p232 = pneg %p231
          // Predicated region
          $region63: #{tpu_custom_call.1} parent=31 // pred_check
            _
          $region64: #{tpu_custom_call.1} parent=31 // pred_check_branch
            %234 = sbr.rel (%p231) target = $region66
          $region65: #{tpu_custom_call.1} parent=31 // pred_region
            %s250 = sand.u32 1, 7
            %p251 = scmp.eq.s32.totalorder %s250, 0
            %p252 = pneg %p251
            // Predicated region
            $region78: #{tpu_custom_call.1} parent=65 // pred_check
              _
            $region79: #{tpu_custom_call.1} parent=65 // pred_check_branch
              %254 = sbr.rel (%p251) target = $region81
            $region80: #{tpu_custom_call.1} parent=65 // pred_region
              %s255 = sand.u32 1, 7
              %s256 = ssub.s32 1, %s255
              %s257 = scalar_lea.vmem %s227, %s256
              %s258 = ssub.s32 1, %s255
              %s259 = scalar_lea.vmem %s228, %s258 [#allocation2]
              %s260 = sshll.u32 1, %s255
              %s261 = ssub.s32 %s260, 1
              loop: start=0, step=1, limit=1
              $region82: #{tpu_custom_call.1} parent=80 // loop_pre_header
                _
              $region83: #{tpu_custom_call.1} parent=80 // loop_header
                %s263 = sphi 0, %s267
                %p264 = scmp.ge.s32.totalorder %s263, 1
                %s268 = sphi %s257, %s257
                %s269 = sphi %s259, %s259
              $region84: #{tpu_custom_call.1} parent=80 // loop_header_branch
                %266 = sbr.rel (%p264) target = $region88
              $region85: #{tpu_custom_call.1} parent=80 // loop_body
                %v270 = vld [vmem:[%s268] sm:%s261]
                %271 = vst [vmem:[%s269] sm:%s261] %v270
              $region86: #{tpu_custom_call.1} parent=80 // loop_footer
                %s267 = sadd.s32 1, %s263
              $region87: #{tpu_custom_call.1} parent=80 // loop_footer_branch
                %262 = sbr.rel target = $region83
              $region88: #{tpu_custom_call.1} parent=80 // loop_exit
                _
            $region81: #{tpu_custom_call.1} parent=65 // pred_fallthru
              _
          $region66: #{tpu_custom_call.1} parent=31 // pred_fallthru
            _
          // Predicated region
          $region67: #{tpu_custom_call.1} parent=31 // pred_check
            %p235 = pneg %p231
          $region68: #{tpu_custom_call.1} parent=31 // pred_check_branch
            %237 = sbr.rel (%p235) target = $region70
          $region69: #{tpu_custom_call.1} parent=31 // pred_region
            %s238 = sshll.u32 1, 1
            %s239 = ssub.s32 %s238, 1
            loop: start=0, step=1, limit=1
            $region71: #{tpu_custom_call.1} parent=69 // loop_pre_header
              _
            $region72: #{tpu_custom_call.1} parent=69 // loop_header
              %s241 = sphi 0, %s245
              %p242 = scmp.ge.s32.totalorder %s241, 1
              %s246 = sphi %s227, %s227
              %s247 = sphi %s228, %s228
            $region73: #{tpu_custom_call.1} parent=69 // loop_header_branch
              %244 = sbr.rel (%p242) target = $region77
            $region74: #{tpu_custom_call.1} parent=69 // loop_body
              %v248 = vld [vmem:[%s246] sm:%s239]
              %249 = vst [vmem:[%s247] sm:%s239] %v248
            $region75: #{tpu_custom_call.1} parent=69 // loop_footer
              %s245 = sadd.s32 1, %s241
            $region76: #{tpu_custom_call.1} parent=69 // loop_footer_branch
              %240 = sbr.rel target = $region72
            $region77: #{tpu_custom_call.1} parent=69 // loop_exit
              _
          $region70: #{tpu_custom_call.1} parent=31 // pred_fallthru
            _
          // Predicated region
          $region89: #{tpu_custom_call.1} parent=31 // pred_check
            _
          $region90: #{tpu_custom_call.1} parent=31 // pred_check_branch
            %274 = sbr.rel (0) target = $region92
          $region91: #{tpu_custom_call.1} parent=31 // pred_region
            %275 = vsyncadd %s229, 16
          $region92: #{tpu_custom_call.1} parent=31 // pred_fallthru
            _
          %s276 = sld [smem:[#allocation5 + $0x2]]
          %p277 = scmp.gt.s32.totalorder %s276, 0
          %s278 = scalar_select %p277, %s276, 0
          %p279 = scmp.lt.s32.totalorder %s278, 199
          %s280 = scalar_select %p279, %s278, 199
          %s281 = scalar_lea.vmem %s1, %s280
          %s282 = scalar_lea.vmem [#allocation2], 2
          %s283 = scalar_lea.sflag [#allocation3], 2
          %p285 = scmp.lt.u32.totalorder 1, 8
          %p286 = pneg %p285
          // Predicated region
          $region93: #{tpu_custom_call.1} parent=31 // pred_check
            _
          $region94: #{tpu_custom_call.1} parent=31 // pred_check_branch
            %288 = sbr.rel (%p285) target = $region96
          $region95: #{tpu_custom_call.1} parent=31 // pred_region
            %s304 = sand.u32 1, 7
            %p305 = scmp.eq.s32.totalorder %s304, 0
            %p306 = pneg %p305
            // Predicated region
            $region108: #{tpu_custom_call.1} parent=95 // pred_check
              _
            $region109: #{tpu_custom_call.1} parent=95 // pred_check_branch
              %308 = sbr.rel (%p305) target = $region111
            $region110: #{tpu_custom_call.1} parent=95 // pred_region
              %s309 = sand.u32 1, 7
              %s310 = ssub.s32 1, %s309
              %s311 = scalar_lea.vmem %s281, %s310
              %s312 = ssub.s32 1, %s309
              %s313 = scalar_lea.vmem %s282, %s312 [#allocation2]
              %s314 = sshll.u32 1, %s309
              %s315 = ssub.s32 %s314, 1
              loop: start=0, step=1, limit=1
              $region112: #{tpu_custom_call.1} parent=110 // loop_pre_header
                _
              $region113: #{tpu_custom_call.1} parent=110 // loop_header
                %s317 = sphi 0, %s321
                %p318 = scmp.ge.s32.totalorder %s317, 1
                %s322 = sphi %s311, %s311
                %s323 = sphi %s313, %s313
              $region114: #{tpu_custom_call.1} parent=110 // loop_header_branch
                %320 = sbr.rel (%p318) target = $region118
              $region115: #{tpu_custom_call.1} parent=110 // loop_body
                %v324 = vld [vmem:[%s322] sm:%s315]
                %325 = vst [vmem:[%s323] sm:%s315] %v324
              $region116: #{tpu_custom_call.1} parent=110 // loop_footer
                %s321 = sadd.s32 1, %s317
              $region117: #{tpu_custom_call.1} parent=110 // loop_footer_branch
                %316 = sbr.rel target = $region113
              $region118: #{tpu_custom_call.1} parent=110 // loop_exit
                _
            $region111: #{tpu_custom_call.1} parent=95 // pred_fallthru
              _
          $region96: #{tpu_custom_call.1} parent=31 // pred_fallthru
            _
          // Predicated region
          $region97: #{tpu_custom_call.1} parent=31 // pred_check
            %p289 = pneg %p285
          $region98: #{tpu_custom_call.1} parent=31 // pred_check_branch
            %291 = sbr.rel (%p289) target = $region100
          $region99: #{tpu_custom_call.1} parent=31 // pred_region
            %s292 = sshll.u32 1, 1
            %s293 = ssub.s32 %s292, 1
            loop: start=0, step=1, limit=1
            $region101: #{tpu_custom_call.1} parent=99 // loop_pre_header
              _
            $region102: #{tpu_custom_call.1} parent=99 // loop_header
              %s295 = sphi 0, %s299
              %p296 = scmp.ge.s32.totalorder %s295, 1
              %s300 = sphi %s281, %s281
              %s301 = sphi %s282, %s282
            $region103: #{tpu_custom_call.1} parent=99 // loop_header_branch
              %298 = sbr.rel (%p296) target = $region107
            $region104: #{tpu_custom_call.1} parent=99 // loop_body
              %v302 = vld [vmem:[%s300] sm:%s293]
              %303 = vst [vmem:[%s301] sm:%s293] %v302
            $region105: #{tpu_custom_call.1} parent=99 // loop_footer
              %s299 = sadd.s32 1, %s295
            $region106: #{tpu_custom_call.1} parent=99 // loop_footer_branch
              %294 = sbr.rel target = $region102
            $region107: #{tpu_custom_call.1} parent=99 // loop_exit
              _
          $region100: #{tpu_custom_call.1} parent=31 // pred_fallthru
            _
          // Predicated region
          $region119: #{tpu_custom_call.1} parent=31 // pred_check
            _
          $region120: #{tpu_custom_call.1} parent=31 // pred_check_branch
            %328 = sbr.rel (0) target = $region122
          $region121: #{tpu_custom_call.1} parent=31 // pred_region
            %329 = vsyncadd %s283, 16
          $region122: #{tpu_custom_call.1} parent=31 // pred_fallthru
            _
          %s330 = sld [smem:[#allocation5 + $0x3]]
          %p331 = scmp.gt.s32.totalorder %s330, 0
          %s332 = scalar_select %p331, %s330, 0
          %p333 = scmp.lt.s32.totalorder %s332, 199
          %s334 = scalar_select %p333, %s332, 199
          %s335 = scalar_lea.vmem %s1, %s334
          %s336 = scalar_lea.vmem [#allocation2], 3
          %s337 = scalar_lea.sflag [#allocation3], 3
          %p339 = scmp.lt.u32.totalorder 1, 8
          %p340 = pneg %p339
          // Predicated region
          $region123: #{tpu_custom_call.1} parent=31 // pred_check
            _
          $region124: #{tpu_custom_call.1} parent=31 // pred_check_branch
            %342 = sbr.rel (%p339) target = $region126
          $region125: #{tpu_custom_call.1} parent=31 // pred_region
            %s358 = sand.u32 1, 7
            %p359 = scmp.eq.s32.totalorder %s358, 0
            %p360 = pneg %p359
            // Predicated region
            $region138: #{tpu_custom_call.1} parent=125 // pred_check
              _
            $region139: #{tpu_custom_call.1} parent=125 // pred_check_branch
              %362 = sbr.rel (%p359) target = $region141
            $region140: #{tpu_custom_call.1} parent=125 // pred_region
              %s363 = sand.u32 1, 7
              %s364 = ssub.s32 1, %s363
              %s365 = scalar_lea.vmem %s335, %s364
              %s366 = ssub.s32 1, %s363
              %s367 = scalar_lea.vmem %s336, %s366 [#allocation2]
              %s368 = sshll.u32 1, %s363
              %s369 = ssub.s32 %s368, 1
              loop: start=0, step=1, limit=1
              $region142: #{tpu_custom_call.1} parent=140 // loop_pre_header
                _
              $region143: #{tpu_custom_call.1} parent=140 // loop_header
                %s371 = sphi 0, %s375
                %p372 = scmp.ge.s32.totalorder %s371, 1
                %s376 = sphi %s365, %s365
                %s377 = sphi %s367, %s367
              $region144: #{tpu_custom_call.1} parent=140 // loop_header_branch
                %374 = sbr.rel (%p372) target = $region148
              $region145: #{tpu_custom_call.1} parent=140 // loop_body
                %v378 = vld [vmem:[%s376] sm:%s369]
                %379 = vst [vmem:[%s377] sm:%s369] %v378
              $region146: #{tpu_custom_call.1} parent=140 // loop_footer
                %s375 = sadd.s32 1, %s371
              $region147: #{tpu_custom_call.1} parent=140 // loop_footer_branch
                %370 = sbr.rel target = $region143
              $region148: #{tpu_custom_call.1} parent=140 // loop_exit
                _
            $region141: #{tpu_custom_call.1} parent=125 // pred_fallthru
              _
          $region126: #{tpu_custom_call.1} parent=31 // pred_fallthru
            _
          // Predicated region
          $region127: #{tpu_custom_call.1} parent=31 // pred_check
            %p343 = pneg %p339
          $region128: #{tpu_custom_call.1} parent=31 // pred_check_branch
            %345 = sbr.rel (%p343) target = $region130
          $region129: #{tpu_custom_call.1} parent=31 // pred_region
            %s346 = sshll.u32 1, 1
            %s347 = ssub.s32 %s346, 1
            loop: start=0, step=1, limit=1
            $region131: #{tpu_custom_call.1} parent=129 // loop_pre_header
              _
            $region132: #{tpu_custom_call.1} parent=129 // loop_header
              %s349 = sphi 0, %s353
              %p350 = scmp.ge.s32.totalorder %s349, 1
              %s354 = sphi %s335, %s335
              %s355 = sphi %s336, %s336
            $region133: #{tpu_custom_call.1} parent=129 // loop_header_branch
              %352 = sbr.rel (%p350) target = $region137
            $region134: #{tpu_custom_call.1} parent=129 // loop_body
              %v356 = vld [vmem:[%s354] sm:%s347]
              %357 = vst [vmem:[%s355] sm:%s347] %v356
            $region135: #{tpu_custom_call.1} parent=129 // loop_footer
              %s353 = sadd.s32 1, %s349
            $region136: #{tpu_custom_call.1} parent=129 // loop_footer_branch
              %348 = sbr.rel target = $region132
            $region137: #{tpu_custom_call.1} parent=129 // loop_exit
              _
          $region130: #{tpu_custom_call.1} parent=31 // pred_fallthru
            _
          // Predicated region
          $region149: #{tpu_custom_call.1} parent=31 // pred_check
            _
          $region150: #{tpu_custom_call.1} parent=31 // pred_check_branch
            %382 = sbr.rel (0) target = $region152
          $region151: #{tpu_custom_call.1} parent=31 // pred_region
            %383 = vsyncadd %s337, 16
          $region152: #{tpu_custom_call.1} parent=31 // pred_fallthru
            _
          %s384 = sld [smem:[#allocation5 + $0x4]]
          %p385 = scmp.gt.s32.totalorder %s384, 0
          %s386 = scalar_select %p385, %s384, 0
          %p387 = scmp.lt.s32.totalorder %s386, 199
          %s388 = scalar_select %p387, %s386, 199
          %s389 = scalar_lea.vmem %s1, %s388
          %s390 = scalar_lea.vmem [#allocation2], 4
          %s391 = scalar_lea.sflag [#allocation3], 4
          %p393 = scmp.lt.u32.totalorder 1, 8
          %p394 = pneg %p393
          // Predicated region
          $region153: #{tpu_custom_call.1} parent=31 // pred_check
            _
          $region154: #{tpu_custom_call.1} parent=31 // pred_check_branch
            %396 = sbr.rel (%p393) target = $region156
          $region155: #{tpu_custom_call.1} parent=31 // pred_region
            %s412 = sand.u32 1, 7
            %p413 = scmp.eq.s32.totalorder %s412, 0
            %p414 = pneg %p413
            // Predicated region
            $region168: #{tpu_custom_call.1} parent=155 // pred_check
              _
            $region169: #{tpu_custom_call.1} parent=155 // pred_check_branch
              %416 = sbr.rel (%p413) target = $region171
            $region170: #{tpu_custom_call.1} parent=155 // pred_region
              %s417 = sand.u32 1, 7
              %s418 = ssub.s32 1, %s417
              %s419 = scalar_lea.vmem %s389, %s418
              %s420 = ssub.s32 1, %s417
              %s421 = scalar_lea.vmem %s390, %s420 [#allocation2]
              %s422 = sshll.u32 1, %s417
              %s423 = ssub.s32 %s422, 1
              loop: start=0, step=1, limit=1
              $region172: #{tpu_custom_call.1} parent=170 // loop_pre_header
                _
              $region173: #{tpu_custom_call.1} parent=170 // loop_header
                %s425 = sphi 0, %s429
                %p426 = scmp.ge.s32.totalorder %s425, 1
                %s430 = sphi %s419, %s419
                %s431 = sphi %s421, %s421
              $region174: #{tpu_custom_call.1} parent=170 // loop_header_branch
                %428 = sbr.rel (%p426) target = $region178
              $region175: #{tpu_custom_call.1} parent=170 // loop_body
                %v432 = vld [vmem:[%s430] sm:%s423]
                %433 = vst [vmem:[%s431] sm:%s423] %v432
              $region176: #{tpu_custom_call.1} parent=170 // loop_footer
                %s429 = sadd.s32 1, %s425
              $region177: #{tpu_custom_call.1} parent=170 // loop_footer_branch
                %424 = sbr.rel target = $region173
              $region178: #{tpu_custom_call.1} parent=170 // loop_exit
                _
            $region171: #{tpu_custom_call.1} parent=155 // pred_fallthru
              _
          $region156: #{tpu_custom_call.1} parent=31 // pred_fallthru
            _
          // Predicated region
          $region157: #{tpu_custom_call.1} parent=31 // pred_check
            %p397 = pneg %p393
          $region158: #{tpu_custom_call.1} parent=31 // pred_check_branch
            %399 = sbr.rel (%p397) target = $region160
          $region159: #{tpu_custom_call.1} parent=31 // pred_region
            %s400 = sshll.u32 1, 1
            %s401 = ssub.s32 %s400, 1
            loop: start=0, step=1, limit=1
            $region161: #{tpu_custom_call.1} parent=159 // loop_pre_header
              _
            $region162: #{tpu_custom_call.1} parent=159 // loop_header
              %s403 = sphi 0, %s407
              %p404 = scmp.ge.s32.totalorder %s403, 1
              %s408 = sphi %s389, %s389
              %s409 = sphi %s390, %s390
            $region163: #{tpu_custom_call.1} parent=159 // loop_header_branch
              %406 = sbr.rel (%p404) target = $region167
            $region164: #{tpu_custom_call.1} parent=159 // loop_body
              %v410 = vld [vmem:[%s408] sm:%s401]
              %411 = vst [vmem:[%s409] sm:%s401] %v410
            $region165: #{tpu_custom_call.1} parent=159 // loop_footer
              %s407 = sadd.s32 1, %s403
            $region166: #{tpu_custom_call.1} parent=159 // loop_footer_branch
              %402 = sbr.rel target = $region162
            $region167: #{tpu_custom_call.1} parent=159 // loop_exit
              _
          $region160: #{tpu_custom_call.1} parent=31 // pred_fallthru
            _
          // Predicated region
          $region179: #{tpu_custom_call.1} parent=31 // pred_check
            _
          $region180: #{tpu_custom_call.1} parent=31 // pred_check_branch
            %436 = sbr.rel (0) target = $region182
          $region181: #{tpu_custom_call.1} parent=31 // pred_region
            %437 = vsyncadd %s391, 16
          $region182: #{tpu_custom_call.1} parent=31 // pred_fallthru
            _
          %s438 = sld [smem:[#allocation5 + $0x5]]
          %p439 = scmp.gt.s32.totalorder %s438, 0
          %s440 = scalar_select %p439, %s438, 0
          %p441 = scmp.lt.s32.totalorder %s440, 199
          %s442 = scalar_select %p441, %s440, 199
          %s443 = scalar_lea.vmem %s1, %s442
          %s444 = scalar_lea.vmem [#allocation2], 5
          %s445 = scalar_lea.sflag [#allocation3], 5
          %p447 = scmp.lt.u32.totalorder 1, 8
          %p448 = pneg %p447
          // Predicated region
          $region183: #{tpu_custom_call.1} parent=31 // pred_check
            _
          $region184: #{tpu_custom_call.1} parent=31 // pred_check_branch
            %450 = sbr.rel (%p447) target = $region186
          $region185: #{tpu_custom_call.1} parent=31 // pred_region
            %s466 = sand.u32 1, 7
            %p467 = scmp.eq.s32.totalorder %s466, 0
            %p468 = pneg %p467
            // Predicated region
            $region198: #{tpu_custom_call.1} parent=185 // pred_check
              _
            $region199: #{tpu_custom_call.1} parent=185 // pred_check_branch
              %470 = sbr.rel (%p467) target = $region201
            $region200: #{tpu_custom_call.1} parent=185 // pred_region
              %s471 = sand.u32 1, 7
              %s472 = ssub.s32 1, %s471
              %s473 = scalar_lea.vmem %s443, %s472
              %s474 = ssub.s32 1, %s471
              %s475 = scalar_lea.vmem %s444, %s474 [#allocation2]
              %s476 = sshll.u32 1, %s471
              %s477 = ssub.s32 %s476, 1
              loop: start=0, step=1, limit=1
              $region202: #{tpu_custom_call.1} parent=200 // loop_pre_header
                _
              $region203: #{tpu_custom_call.1} parent=200 // loop_header
                %s479 = sphi 0, %s483
                %p480 = scmp.ge.s32.totalorder %s479, 1
                %s484 = sphi %s473, %s473
                %s485 = sphi %s475, %s475
              $region204: #{tpu_custom_call.1} parent=200 // loop_header_branch
                %482 = sbr.rel (%p480) target = $region208
              $region205: #{tpu_custom_call.1} parent=200 // loop_body
                %v486 = vld [vmem:[%s484] sm:%s477]
                %487 = vst [vmem:[%s485] sm:%s477] %v486
              $region206: #{tpu_custom_call.1} parent=200 // loop_footer
                %s483 = sadd.s32 1, %s479
              $region207: #{tpu_custom_call.1} parent=200 // loop_footer_branch
                %478 = sbr.rel target = $region203
              $region208: #{tpu_custom_call.1} parent=200 // loop_exit
                _
            $region201: #{tpu_custom_call.1} parent=185 // pred_fallthru
              _
          $region186: #{tpu_custom_call.1} parent=31 // pred_fallthru
            _
          // Predicated region
          $region187: #{tpu_custom_call.1} parent=31 // pred_check
            %p451 = pneg %p447
          $region188: #{tpu_custom_call.1} parent=31 // pred_check_branch
            %453 = sbr.rel (%p451) target = $region190
          $region189: #{tpu_custom_call.1} parent=31 // pred_region
            %s454 = sshll.u32 1, 1
            %s455 = ssub.s32 %s454, 1
            loop: start=0, step=1, limit=1
            $region191: #{tpu_custom_call.1} parent=189 // loop_pre_header
              _
            $region192: #{tpu_custom_call.1} parent=189 // loop_header
              %s457 = sphi 0, %s461
              %p458 = scmp.ge.s32.totalorder %s457, 1
              %s462 = sphi %s443, %s443
              %s463 = sphi %s444, %s444
            $region193: #{tpu_custom_call.1} parent=189 // loop_header_branch
              %460 = sbr.rel (%p458) target = $region197
            $region194: #{tpu_custom_call.1} parent=189 // loop_body
              %v464 = vld [vmem:[%s462] sm:%s455]
              %465 = vst [vmem:[%s463] sm:%s455] %v464
            $region195: #{tpu_custom_call.1} parent=189 // loop_footer
              %s461 = sadd.s32 1, %s457
            $region196: #{tpu_custom_call.1} parent=189 // loop_footer_branch
              %456 = sbr.rel target = $region192
            $region197: #{tpu_custom_call.1} parent=189 // loop_exit
              _
          $region190: #{tpu_custom_call.1} parent=31 // pred_fallthru
            _
          // Predicated region
          $region209: #{tpu_custom_call.1} parent=31 // pred_check
            _
          $region210: #{tpu_custom_call.1} parent=31 // pred_check_branch
            %490 = sbr.rel (0) target = $region212
          $region211: #{tpu_custom_call.1} parent=31 // pred_region
            %491 = vsyncadd %s445, 16
          $region212: #{tpu_custom_call.1} parent=31 // pred_fallthru
            _
          %s492 = sld [smem:[#allocation5 + $0x6]]
          %p493 = scmp.gt.s32.totalorder %s492, 0
          %s494 = scalar_select %p493, %s492, 0
          %p495 = scmp.lt.s32.totalorder %s494, 199
          %s496 = scalar_select %p495, %s494, 199
          %s497 = scalar_lea.vmem %s1, %s496
          %s498 = scalar_lea.vmem [#allocation2], 6
          %s499 = scalar_lea.sflag [#allocation3], 6
          %p501 = scmp.lt.u32.totalorder 1, 8
          %p502 = pneg %p501
          // Predicated region
          $region213: #{tpu_custom_call.1} parent=31 // pred_check
            _
          $region214: #{tpu_custom_call.1} parent=31 // pred_check_branch
            %504 = sbr.rel (%p501) target = $region216
          $region215: #{tpu_custom_call.1} parent=31 // pred_region
            %s520 = sand.u32 1, 7
            %p521 = scmp.eq.s32.totalorder %s520, 0
            %p522 = pneg %p521
            // Predicated region
            $region228: #{tpu_custom_call.1} parent=215 // pred_check
              _
            $region229: #{tpu_custom_call.1} parent=215 // pred_check_branch
              %524 = sbr.rel (%p521) target = $region231
            $region230: #{tpu_custom_call.1} parent=215 // pred_region
              %s525 = sand.u32 1, 7
              %s526 = ssub.s32 1, %s525
              %s527 = scalar_lea.vmem %s497, %s526
              %s528 = ssub.s32 1, %s525
              %s529 = scalar_lea.vmem %s498, %s528 [#allocation2]
              %s530 = sshll.u32 1, %s525
              %s531 = ssub.s32 %s530, 1
              loop: start=0, step=1, limit=1
              $region232: #{tpu_custom_call.1} parent=230 // loop_pre_header
                _
              $region233: #{tpu_custom_call.1} parent=230 // loop_header
                %s533 = sphi 0, %s537
                %p534 = scmp.ge.s32.totalorder %s533, 1
                %s538 = sphi %s527, %s527
                %s539 = sphi %s529, %s529
              $region234: #{tpu_custom_call.1} parent=230 // loop_header_branch
                %536 = sbr.rel (%p534) target = $region238
              $region235: #{tpu_custom_call.1} parent=230 // loop_body
                %v540 = vld [vmem:[%s538] sm:%s531]
                %541 = vst [vmem:[%s539] sm:%s531] %v540
              $region236: #{tpu_custom_call.1} parent=230 // loop_footer
                %s537 = sadd.s32 1, %s533
              $region237: #{tpu_custom_call.1} parent=230 // loop_footer_branch
                %532 = sbr.rel target = $region233
              $region238: #{tpu_custom_call.1} parent=230 // loop_exit
                _
            $region231: #{tpu_custom_call.1} parent=215 // pred_fallthru
              _
          $region216: #{tpu_custom_call.1} parent=31 // pred_fallthru
            _
          // Predicated region
          $region217: #{tpu_custom_call.1} parent=31 // pred_check
            %p505 = pneg %p501
          $region218: #{tpu_custom_call.1} parent=31 // pred_check_branch
            %507 = sbr.rel (%p505) target = $region220
          $region219: #{tpu_custom_call.1} parent=31 // pred_region
            %s508 = sshll.u32 1, 1
            %s509 = ssub.s32 %s508, 1
            loop: start=0, step=1, limit=1
            $region221: #{tpu_custom_call.1} parent=219 // loop_pre_header
              _
            $region222: #{tpu_custom_call.1} parent=219 // loop_header
              %s511 = sphi 0, %s515
              %p512 = scmp.ge.s32.totalorder %s511, 1
              %s516 = sphi %s497, %s497
              %s517 = sphi %s498, %s498
            $region223: #{tpu_custom_call.1} parent=219 // loop_header_branch
              %514 = sbr.rel (%p512) target = $region227
            $region224: #{tpu_custom_call.1} parent=219 // loop_body
              %v518 = vld [vmem:[%s516] sm:%s509]
              %519 = vst [vmem:[%s517] sm:%s509] %v518
            $region225: #{tpu_custom_call.1} parent=219 // loop_footer
              %s515 = sadd.s32 1, %s511
            $region226: #{tpu_custom_call.1} parent=219 // loop_footer_branch
              %510 = sbr.rel target = $region222
            $region227: #{tpu_custom_call.1} parent=219 // loop_exit
              _
          $region220: #{tpu_custom_call.1} parent=31 // pred_fallthru
            _
          // Predicated region
          $region239: #{tpu_custom_call.1} parent=31 // pred_check
            _
          $region240: #{tpu_custom_call.1} parent=31 // pred_check_branch
            %544 = sbr.rel (0) target = $region242
          $region241: #{tpu_custom_call.1} parent=31 // pred_region
            %545 = vsyncadd %s499, 16
          $region242: #{tpu_custom_call.1} parent=31 // pred_fallthru
            _
          %s546 = sld [smem:[#allocation5 + $0x7]]
          %p547 = scmp.gt.s32.totalorder %s546, 0
          %s548 = scalar_select %p547, %s546, 0
          %p549 = scmp.lt.s32.totalorder %s548, 199
          %s550 = scalar_select %p549, %s548, 199
          %s551 = scalar_lea.vmem %s1, %s550
          %s552 = scalar_lea.vmem [#allocation2], 7
          %s553 = scalar_lea.sflag [#allocation3], 7
          %p555 = scmp.lt.u32.totalorder 1, 8
          %p556 = pneg %p555
          // Predicated region
          $region243: #{tpu_custom_call.1} parent=31 // pred_check
            _
          $region244: #{tpu_custom_call.1} parent=31 // pred_check_branch
            %558 = sbr.rel (%p555) target = $region246
          $region245: #{tpu_custom_call.1} parent=31 // pred_region
            %s574 = sand.u32 1, 7
            %p575 = scmp.eq.s32.totalorder %s574, 0
            %p576 = pneg %p575
            // Predicated region
            $region258: #{tpu_custom_call.1} parent=245 // pred_check
              _
            $region259: #{tpu_custom_call.1} parent=245 // pred_check_branch
              %578 = sbr.rel (%p575) target = $region261
            $region260: #{tpu_custom_call.1} parent=245 // pred_region
              %s579 = sand.u32 1, 7
              %s580 = ssub.s32 1, %s579
              %s581 = scalar_lea.vmem %s551, %s580
              %s582 = ssub.s32 1, %s579
              %s583 = scalar_lea.vmem %s552, %s582 [#allocation2]
              %s584 = sshll.u32 1, %s579
              %s585 = ssub.s32 %s584, 1
              loop: start=0, step=1, limit=1
              $region262: #{tpu_custom_call.1} parent=260 // loop_pre_header
                _
              $region263: #{tpu_custom_call.1} parent=260 // loop_header
                %s587 = sphi 0, %s591
                %p588 = scmp.ge.s32.totalorder %s587, 1
                %s592 = sphi %s581, %s581
                %s593 = sphi %s583, %s583
              $region264: #{tpu_custom_call.1} parent=260 // loop_header_branch
                %590 = sbr.rel (%p588) target = $region268
              $region265: #{tpu_custom_call.1} parent=260 // loop_body
                %v594 = vld [vmem:[%s592] sm:%s585]
                %595 = vst [vmem:[%s593] sm:%s585] %v594
              $region266: #{tpu_custom_call.1} parent=260 // loop_footer
                %s591 = sadd.s32 1, %s587
              $region267: #{tpu_custom_call.1} parent=260 // loop_footer_branch
                %586 = sbr.rel target = $region263
              $region268: #{tpu_custom_call.1} parent=260 // loop_exit
                _
            $region261: #{tpu_custom_call.1} parent=245 // pred_fallthru
              _
          $region246: #{tpu_custom_call.1} parent=31 // pred_fallthru
            _
          // Predicated region
          $region247: #{tpu_custom_call.1} parent=31 // pred_check
            %p559 = pneg %p555
          $region248: #{tpu_custom_call.1} parent=31 // pred_check_branch
            %561 = sbr.rel (%p559) target = $region250
          $region249: #{tpu_custom_call.1} parent=31 // pred_region
            %s562 = sshll.u32 1, 1
            %s563 = ssub.s32 %s562, 1
            loop: start=0, step=1, limit=1
            $region251: #{tpu_custom_call.1} parent=249 // loop_pre_header
              _
            $region252: #{tpu_custom_call.1} parent=249 // loop_header
              %s565 = sphi 0, %s569
              %p566 = scmp.ge.s32.totalorder %s565, 1
              %s570 = sphi %s551, %s551
              %s571 = sphi %s552, %s552
            $region253: #{tpu_custom_call.1} parent=249 // loop_header_branch
              %568 = sbr.rel (%p566) target = $region257
            $region254: #{tpu_custom_call.1} parent=249 // loop_body
              %v572 = vld [vmem:[%s570] sm:%s563]
              %573 = vst [vmem:[%s571] sm:%s563] %v572
            $region255: #{tpu_custom_call.1} parent=249 // loop_footer
              %s569 = sadd.s32 1, %s565
            $region256: #{tpu_custom_call.1} parent=249 // loop_footer_branch
              %564 = sbr.rel target = $region252
            $region257: #{tpu_custom_call.1} parent=249 // loop_exit
              _
          $region250: #{tpu_custom_call.1} parent=31 // pred_fallthru
            _
          // Predicated region
          $region269: #{tpu_custom_call.1} parent=31 // pred_check
            _
          $region270: #{tpu_custom_call.1} parent=31 // pred_check_branch
            %598 = sbr.rel (0) target = $region272
          $region271: #{tpu_custom_call.1} parent=31 // pred_region
            %599 = vsyncadd %s553, 16
          $region272: #{tpu_custom_call.1} parent=31 // pred_fallthru
            _
          %s600 = smul.u32 1, 1
          %s601 = sshll.u32 %s600, 4
          %602 = dma.done [#allocation3], %s601
          %s603 = sshll.u32 %s600, 4
          %604 = dma.done %s229, %s603
          %s605 = sshll.u32 %s600, 4
          %606 = dma.done %s283, %s605
          %s607 = sshll.u32 %s600, 4
          %608 = dma.done %s337, %s607
          %s609 = sshll.u32 %s600, 4
          %610 = dma.done %s391, %s609
          %s611 = sshll.u32 %s600, 4
          %612 = dma.done %s445, %s611
          %s613 = sshll.u32 %s600, 4
          %614 = dma.done %s499, %s613
          %s615 = sshll.u32 %s600, 4
          %616 = dma.done %s553, %s615
        $region32: #{tpu_custom_call.1} parent=27 // pred_fallthru
          _
        %v617 = vld [vmem:[#allocation2] sm:$0xff]
        %v618 = vld [vmem:[%s161] sm:$0xff]
        %v619 = vld [vmem:[%s161 + $0x8] sm:$0xff]
        %v620 = vld [vmem:[%s161 + $0x10] sm:$0xff]
        %v621 = vld [vmem:[%s161 + $0x18] sm:$0xff]
        %v622 = vld [vmem:[%s161 + $0x20] sm:$0xff]
        %v623 = vld [vmem:[%s161 + $0x28] sm:$0xff]
        %v624 = vld [vmem:[%s161 + $0x30] sm:$0xff]
        %v625 = vld [vmem:[%s161 + $0x38] sm:$0xff]
        %v626 = vld [vmem:[%s161 + $0x40] sm:$0xff]
        %v627 = vld [vmem:[%s161 + $0x48] sm:$0xff]
        %v628 = vld [vmem:[%s161 + $0x50] sm:$0xff]
        %v629 = vld [vmem:[%s161 + $0x58] sm:$0xff]
        %v630 = vld [vmem:[%s161 + $0x60] sm:$0xff]
        %v631 = vld [vmem:[%s161 + $0x68] sm:$0xff]
        %v632 = vld [vmem:[%s161 + $0x70] sm:$0xff]
        %v633 = vld [vmem:[%s161 + $0x78] sm:$0xff]
        %v634 = vld [vmem:[%s165] sm:$0x1]
        %v636 = vlaneseq
        %v637 = vshrl.u32 %v636, 7
        %v638 = vsub.s32 0, %v637
        %v639 = vrot.slane %v634, %v638
        %vm641 = vcmask 261120
        %v643 = vsel %vm641, %v617, 0
        %v646 = vsel %vm641, %v618, 0
        %v649 = vsel %vm641, %v619, 0
        %v652 = vsel %vm641, %v620, 0
        %v655 = vsel %vm641, %v621, 0
        %v658 = vsel %vm641, %v622, 0
        %v661 = vsel %vm641, %v623, 0
        %v664 = vsel %vm641, %v624, 0
        %v667 = vsel %vm641, %v625, 0
        %v670 = vsel %vm641, %v626, 0
        %v673 = vsel %vm641, %v627, 0
        %v676 = vsel %vm641, %v628, 0
        %v679 = vsel %vm641, %v629, 0
        %v682 = vsel %vm641, %v630, 0
        %v685 = vsel %vm641, %v631, 0
        %v688 = vsel %vm641, %v632, 0
        %v691 = vsel %vm641, %v633, 0
        %693 = vmatprep.subr.mxu0 0.0
        %694 = vmatpush1.xpose.msra.mxu0 %v691
        %695 = vmatprep.subr.mxu0 0.0
        %696 = vmatpush1.xpose.msra.mxu0 %v688
        %697 = vmatprep.subr.mxu0 0.0
        %698 = vmatpush1.xpose.msra.mxu0 %v685
        %699 = vmatprep.subr.mxu0 0.0
        %700 = vmatpush1.xpose.msra.mxu0 %v682
        %701 = vmatprep.subr.mxu0 0.0
        %702 = vmatpush1.xpose.msra.mxu0 %v679
        %703 = vmatprep.subr.mxu0 0.0
        %704 = vmatpush1.xpose.msra.mxu0 %v676
        %705 = vmatprep.subr.mxu0 0.0
        %706 = vmatpush1.xpose.msra.mxu0 %v673
        %707 = vmatprep.subr.mxu0 0.0
        %708 = vmatpush1.xpose.msra.mxu0 %v670
        %709 = vmatprep.subr.mxu0 0.0
        %710 = vmatpush1.xpose.msra.mxu0 %v667
        %711 = vmatprep.subr.mxu0 0.0
        %712 = vmatpush1.xpose.msra.mxu0 %v664
        %713 = vmatprep.subr.mxu0 0.0
        %714 = vmatpush1.xpose.msra.mxu0 %v661
        %715 = vmatprep.subr.mxu0 0.0
        %716 = vmatpush1.xpose.msra.mxu0 %v658
        %717 = vmatprep.subr.mxu0 0.0
        %718 = vmatpush1.xpose.msra.mxu0 %v655
        %719 = vmatprep.subr.mxu0 0.0
        %720 = vmatpush1.xpose.msra.mxu0 %v652
        %721 = vmatprep.subr.mxu0 0.0
        %722 = vmatpush1.xpose.msra.mxu0 %v649
        %723 = vmatprep.subr.mxu0 0.0
        %724 = vmatpush1.xpose.msra.mxu0 %v646
        %725 = vmatprep.subr.mxu0 0.0
        %726 = vmatpush2.xpose.msra.mxu0 0.0
        %727 = vmatprep.subr.mxu0 0.0
        %728 = vmatpush2.xpose.msra.mxu0 0.0
        %729 = vmatprep.subr.mxu0 0.0
        %730 = vmatpush2.xpose.msra.mxu0 0.0
        %731 = vmatprep.subr.mxu0 0.0
        %732 = vmatpush2.xpose.msra.mxu0 0.0
        %733 = vmatprep.subr.mxu0 0.0
        %734 = vmatpush2.xpose.msra.mxu0 0.0
        %735 = vmatprep.subr.mxu0 0.0
        %736 = vmatpush2.xpose.msra.mxu0 0.0
        %737 = vmatprep.subr.mxu0 0.0
        %738 = vmatpush2.xpose.msra.mxu0 0.0
        %739 = vmatprep.subr.mxu0 0.0
        %740 = vmatpush2.xpose.msra.mxu0 0.0
        %741 = vmatprep.subr.mxu0 0.0
        %742 = vmatpush2.xpose.msra.mxu0 0.0
        %743 = vmatprep.subr.mxu0 0.0
        %744 = vmatpush2.xpose.msra.mxu0 0.0
        %745 = vmatprep.subr.mxu0 0.0
        %746 = vmatpush2.xpose.msra.mxu0 0.0
        %747 = vmatprep.subr.mxu0 0.0
        %748 = vmatpush2.xpose.msra.mxu0 0.0
        %749 = vmatprep.subr.mxu0 0.0
        %750 = vmatpush2.xpose.msra.mxu0 0.0
        %751 = vmatprep.subr.mxu0 0.0
        %752 = vmatpush2.xpose.msra.mxu0 0.0
        %753 = vmatprep.subr.mxu0 0.0
        %754 = vmatpush2.xpose.msra.mxu0 0.0
        %755 = vmatprep.subr.mxu0 0.0
        %756 = vmatpush2.xpose.msra.mxu0 0.0
        %757 = vmatprep.mubr.f32.mxu0 0.0
        %758 = vmatmul.mubr.f32.gmra.mxu0 %v643
        %v759 = vpop.f32.mrf.mxu0
        %v760 = vadd.f32 %v639, %v759
        %v761 = vpop.f32.mrf.mxu0
        %762 = vdwg.mxu0
        %763 = vst [vmem:[%s156] sm:$0xff] %v760
        %s764 = sand.u32 %s84, 1
        %s765 = scalar_lea.sflag [#allocation7], %s764
        %s766 = sand.u32 %s84, 1
        %s767 = smul.addr %s766, 8
        %s768 = scalar_lea.vmem [#allocation6], %s767
        // Predicated region
        $region273: #{tpu_custom_call.1} parent=27 // pred_check
          %p769 = pneg %p94
        $region274: #{tpu_custom_call.1} parent=27 // pred_check_branch
          %771 = sbr.rel (%p769) target = $region276
        $region275: #{tpu_custom_call.1} parent=27 // pred_region
          %s773 = ssub.s32 128, 128
          %774 = vsyncadd %s765, %s773
          %s775 = smul.addr %s24, 128
          %s776 = scalar_lea.hbm %s4, %s775
          %s778 = sshll.u32 %s768, 4
          %s779 = int_to_ptr.vmem [resolvable:$true] %s778
          %781 = dma.vmem_to_hbm [thread:$0]  %s779, 128, %s776, %s765
        $region276: #{tpu_custom_call.1} parent=27 // pred_fallthru
          _
      $region28: #{tpu_custom_call.1} parent=5 // pred_fallthru
        _
      %p782 = scmp.le.s32.totalorder 2, %s19
      // Predicated region
      $region277: #{tpu_custom_call.1} parent=5 // pred_check
        %p783 = pneg %p782
      $region278: #{tpu_custom_call.1} parent=5 // pred_check_branch
        %785 = sbr.rel (%p783) target = $region280
      $region279: #{tpu_custom_call.1} parent=5 // pred_region
        %s786 = ssub.s32 %s19, 2
        // Predicated region
        $region281: #{tpu_custom_call.1} parent=279 // pred_check
          %p787 = pneg %p100
        $region282: #{tpu_custom_call.1} parent=279 // pred_check_branch
          %789 = sbr.rel (%p787) target = $region284
        $region283: #{tpu_custom_call.1} parent=279 // pred_region
          %s790 = sand.u32 %s85, 1
          %s791 = scalar_lea.sflag [#allocation7], %s790
          %s792 = sand.u32 %s85, 1
          %s793 = smul.addr %s792, 8
          %s794 = scalar_lea.vmem [#allocation6], %s793
          %795 = dma.done %s791, 128
        $region284: #{tpu_custom_call.1} parent=279 // pred_fallthru
          _
      $region280: #{tpu_custom_call.1} parent=5 // pred_fallthru
        _
    $region6: #{tpu_custom_call.1} parent=1 // loop_footer
      %s23 = sadd.s32 1, %s19
    $region7: #{tpu_custom_call.1} parent=1 // loop_footer_branch
      %18 = sbr.rel target = $region3
    $region8: #{tpu_custom_call.1} parent=1 // loop_exit
      _
    %796 = vsyncpa [#allocation7], 1
    %s797 = scalar_lea.sflag [#allocation7], 1
    %798 = vsyncpa %s797, 1
  %799 = vsyncmov [#allocation3]
  %s800 = vpop.sfrf %799
  %p801 = scmp.eq.s32.totalorder %s800, 0
  %p802 = pneg %p801
  %804 = shalt.err (%p802)
  %s805 = scalar_lea.sflag [#allocation3], 1
  %806 = vsyncmov %s805
  %s807 = vpop.sfrf %806
  %p808 = scmp.eq.s32.totalorder %s807, 0
  %p809 = pneg %p808
  %811 = shalt.err (%p809)
  %s812 = scalar_lea.sflag [#allocation3], 2
  %813 = vsyncmov %s812
  %s814 = vpop.sfrf %813
  %p815 = scmp.eq.s32.totalorder %s814, 0
  %p816 = pneg %p815
  %818 = shalt.err (%p816)
  %s819 = scalar_lea.sflag [#allocation3], 3
  %820 = vsyncmov %s819
  %s821 = vpop.sfrf %820
  %p822 = scmp.eq.s32.totalorder %s821, 0
  %p823 = pneg %p822
  %825 = shalt.err (%p823)
  %s826 = scalar_lea.sflag [#allocation3], 4
  %827 = vsyncmov %s826
  %s828 = vpop.sfrf %827
  %p829 = scmp.eq.s32.totalorder %s828, 0
  %p830 = pneg %p829
  %832 = shalt.err (%p830)
  %s833 = scalar_lea.sflag [#allocation3], 5
  %834 = vsyncmov %s833
  %s835 = vpop.sfrf %834
  %p836 = scmp.eq.s32.totalorder %s835, 0
  %p837 = pneg %p836
  %839 = shalt.err (%p837)
  %s840 = scalar_lea.sflag [#allocation3], 6
  %841 = vsyncmov %s840
  %s842 = vpop.sfrf %841
  %p843 = scmp.eq.s32.totalorder %s842, 0
  %p844 = pneg %p843
  %846 = shalt.err (%p844)
  %s847 = scalar_lea.sflag [#allocation3], 7
  %848 = vsyncmov %s847
  %s849 = vpop.sfrf %848
  %p850 = scmp.eq.s32.totalorder %s849, 0
  %p851 = pneg %p850
  %853 = shalt.err (%p851)

</llo_original>
